<compile_context>
chip_gen: v7x
topology: tpu7x:2x2x1
jax: 0.10.0
libtpu: 0.0.40
codegen_flags: <defaults>
</compile_context>

<pallas_src>
import functools

import jax
import jax.numpy as jnp
from jax import lax
from jax.experimental import pallas as pl
from jax.experimental.pallas import tpu as pltpu


IN1, H1, H2, OUT = 10, 20, 10, 5   # feature sizes: 10 -> 20 -> 10 -> 20 -> 5


def simplenet_kernel(x_ref,
                     w1_ref, b1_ref,
                     w2_ref, b2_ref,
                     w3_ref, b3_ref,
                     w4_ref, b4_ref,
                     o_ref,
                     *, chunk):
    """One batch tile: x_ref (bt, 10) -> o_ref (bt, 5), natural row-major layout.

    Weights are (in, out), biases (1, out); all fully VMEM-resident.  The tile
    is processed `chunk` rows at a time so intermediates stay tiny while the
    DMA tile (bt) can be made large enough to amortize per-step overhead.
    """
    bt = x_ref.shape[0]
    n_chunks = bt // chunk          # static; wrapper guarantees divisibility

    # Hoist the tiny weight/bias loads out of the loop (a few vregs each).
    w1 = w1_ref[...]; b1 = b1_ref[...]
    w2 = w2_ref[...]; b2 = b2_ref[...]
    w3 = w3_ref[...]; b3 = b3_ref[...]
    w4 = w4_ref[...]; b4 = b4_ref[...]

    def body(i, carry):
        r = pl.multiple_of(i * chunk, chunk)
        x = x_ref[pl.ds(r, chunk), :]                                    # (c, 10)
        a = jnp.dot(x, w1, preferred_element_type=jnp.float32) + b1      # (c, 20)
        h = jnp.maximum(a, 0.0)
        h = jnp.dot(h, w2, preferred_element_type=jnp.float32) + b2      # (c, 10)
        h = jnp.maximum(h, 0.0)
        b = jnp.dot(h, w3, preferred_element_type=jnp.float32) + b3      # (c, 20)
        y = jnp.dot(a + b, w4, preferred_element_type=jnp.float32) + b4  # (c, 5)
        o_ref[pl.ds(r, chunk), :] = y.astype(o_ref.dtype)
        return carry

    lax.fori_loop(0, n_chunks, body, 0)


def simplenet_forward(x, params, *, block_b=8192, chunk_b=512):
    """x: (B, 10).  params: PyTorch-layout weights (out, in) and biases (out,).

    Returns (B, 5) in x.dtype.  The op is HBM-bound, so the tiling targets DMA
    amortization (large batch tile) rather than MXU utilization.
    """
    B = x.shape[0]

    # Batch tile: large to amortize per-grid-step overhead.  If the whole
    # batch fits in one tile use it directly (a full-extent block dim has no
    # 8-row alignment requirement, which also covers tiny B).
    if B <= block_b:
        bt = B
    else:
        bt = int(block_b)
        if bt % 8 != 0:
            raise ValueError("block_b must be a multiple of 8")

    # Inner compute chunk: must divide the tile.
    chunk = chunk_b if (bt >= chunk_b and bt % chunk_b == 0) else bt

    # Ragged last block: out-of-bounds rows hold garbage on input and are
    # masked on the output writeback (they never reach the returned array).
    grid = (pl.cdiv(B, bt),)

    # Kernel-layout params: (in, out) weights, (1, out) biases.  These are
    # <1 KiB tensors; in a real model keep them pre-transposed once.
    w1 = params["w1"].T; b1 = params["b1"].reshape(1, -1)
    w2 = params["w2"].T; b2 = params["b2"].reshape(1, -1)
    w3 = params["w3"].T; b3 = params["b3"].reshape(1, -1)
    w4 = params["w4"].T; b4 = params["b4"].reshape(1, -1)

    def resident():
        # Whole array placed in VMEM once; not pipelined, not double-buffered.
        return pl.BlockSpec(memory_space=pltpu.MemorySpace.VMEM)

    in_specs = [
        pl.BlockSpec((bt, IN1), lambda i: (i, 0)),   # x tile, natural layout
        resident(), resident(),    # w1, b1
        resident(), resident(),    # w2, b2
        resident(), resident(),    # w3, b3
        resident(), resident(),    # w4, b4
    ]
    out_spec = pl.BlockSpec((bt, OUT), lambda i: (i, 0))

    itemsize = x.dtype.itemsize
    param_bytes = sum(int(p.size) * p.dtype.itemsize
                      for p in (w1, b1, w2, b2, w3, b3, w4, b4))
    flops_per_row = 2 * (IN1 * H1 + H1 * H2 + H2 * H1 + H1 * OUT)   # 1400
    cost = pl.CostEstimate(
        flops=flops_per_row * B,
        transcendentals=0,
        bytes_accessed=B * IN1 * itemsize + B * OUT * itemsize + param_bytes,
    )

    return pl.pallas_call(
        functools.partial(simplenet_kernel, chunk=chunk),
        out_shape=jax.ShapeDtypeStruct((B, OUT), x.dtype),
        grid=grid,
        in_specs=in_specs,
        out_specs=out_spec,
        compiler_params=pltpu.CompilerParams(
            dimension_semantics=("parallel",),        # v7x: 2-TC batch sharding
            vmem_limit_bytes=48 * 1024 * 1024,        # v5e default 16 MiB is too small
        ),
        cost_estimate=cost,
    )(x, w1, b1, w2, b2, w3, b3, w4, b4)


def init_params(key):
    """Deterministic init mimicking nn.Linear's uniform(-1/sqrt(fan_in), ...).

    Weights in PyTorch layout (out, in); biases (out,).
    """
    def linear(key, fan_in, fan_out):
        kw, kb = jax.random.split(key)
        bound = 1.0 / (fan_in ** 0.5)
        w = jax.random.uniform(kw, (fan_out, fan_in), jnp.float32, -bound, bound)
        b = jax.random.uniform(kb, (fan_out,), jnp.float32, -bound, bound)
        return w, b

    k1, k2, k3, k4 = jax.random.split(key, 4)
    w1, b1 = linear(k1, IN1, H1)
    w2, b2 = linear(k2, H1, H2)
    w3, b3 = linear(k3, H2, H1)
    w4, b4 = linear(k4, H1, OUT)
    return dict(w1=w1, b1=b1, w2=w2, b2=b2, w3=w3, b3=b3, w4=w4, b4=b4)


def reference_forward(x, p):
    """Pure-JAX reference matching the PyTorch forward exactly (x @ W.T + b)."""
    a = x @ p["w1"].T + p["b1"]
    h = jnp.maximum(a, 0.0)
    h = jnp.maximum(h @ p["w2"].T + p["b2"], 0.0)
    b = h @ p["w3"].T + p["b3"]
    return (a + b) @ p["w4"].T + p["b4"]


if __name__ == "__main__":
    key = jax.random.PRNGKey(0)
    kx1, kx2, kp = jax.random.split(key, 3)
    params = init_params(kp)

    # Small case: single block covering the whole batch.
    B1 = 16
    x1 = jax.random.normal(kx1, (B1, IN1), dtype=jnp.float32)
    out1 = jax.block_until_ready(simplenet_forward(x1, params))
    ref1 = reference_forward(x1, params)
    assert out1.shape == (B1, OUT), out1.shape
    assert jnp.allclose(out1, ref1, atol=1e-5, rtol=1e-5), "mismatch (small case)"

    # Pipelined case: multiple grid steps + multiple inner chunks per step
    # (kept small so the test is quick; production sizes use block_b=8192).
    B2 = 2048
    x2 = jax.random.normal(kx2, (B2, IN1), dtype=jnp.float32)
    out2 = jax.block_until_ready(
        simplenet_forward(x2, params, block_b=1024, chunk_b=256))
    ref2 = reference_forward(x2, params)
    assert out2.shape == (B2, OUT), out2.shape
    assert jnp.allclose(out2, ref2, atol=1e-5, rtol=1e-5), "mismatch (pipelined case)"

    print("KERNEL_OK")
</pallas_src>

<mosaic_0001>
module attributes {stable_mosaic.version = 11 : i64} {
  func.func @simplenet_kernel(%arg0: i32, %arg1: memref<16x10xf32, #tpu.memory_space<vmem>>, %arg2: memref<10x20xf32, #tpu.memory_space<vmem>>, %arg3: memref<1x20xf32, #tpu.memory_space<vmem>>, %arg4: memref<20x10xf32, #tpu.memory_space<vmem>>, %arg5: memref<1x10xf32, #tpu.memory_space<vmem>>, %arg6: memref<10x20xf32, #tpu.memory_space<vmem>>, %arg7: memref<1x20xf32, #tpu.memory_space<vmem>>, %arg8: memref<20x5xf32, #tpu.memory_space<vmem>>, %arg9: memref<1x5xf32, #tpu.memory_space<vmem>>, %arg10: memref<16x5xf32, #tpu.memory_space<vmem>>) attributes {dimension_semantics = [#tpu.dimension_semantics<parallel>], iteration_bounds = array<i64: 1>, scalar_prefetch = 0 : i64, scratch_operands = 0 : i64, tpu.core_type = #tpu.core_type<tc>, window_params = [{transform_indices = @transform_0, window_bounds = array<i64: 16, 10>}, {pipeline_mode = #tpu.pipeline_mode<synchronous>, transform_indices = @transform_1, window_bounds = array<i64: 10, 20>}, {pipeline_mode = #tpu.pipeline_mode<synchronous>, transform_indices = @transform_2, window_bounds = array<i64: 1, 20>}, {pipeline_mode = #tpu.pipeline_mode<synchronous>, transform_indices = @transform_3, window_bounds = array<i64: 20, 10>}, {pipeline_mode = #tpu.pipeline_mode<synchronous>, transform_indices = @transform_4, window_bounds = array<i64: 1, 10>}, {pipeline_mode = #tpu.pipeline_mode<synchronous>, transform_indices = @transform_5, window_bounds = array<i64: 10, 20>}, {pipeline_mode = #tpu.pipeline_mode<synchronous>, transform_indices = @transform_6, window_bounds = array<i64: 1, 20>}, {pipeline_mode = #tpu.pipeline_mode<synchronous>, transform_indices = @transform_7, window_bounds = array<i64: 20, 5>}, {pipeline_mode = #tpu.pipeline_mode<synchronous>, transform_indices = @transform_8, window_bounds = array<i64: 1, 5>}, {transform_indices = @transform_9, window_bounds = array<i64: 16, 5>}]} {
    %c0 = arith.constant 0 : index
    %c0_0 = arith.constant 0 : index
    %0 = vector.load %arg2[%c0, %c0_0] : memref<10x20xf32, #tpu.memory_space<vmem>>, vector<10x20xf32>
    %c0_1 = arith.constant 0 : index
    %c0_2 = arith.constant 0 : index
    %1 = vector.load %arg3[%c0_1, %c0_2] : memref<1x20xf32, #tpu.memory_space<vmem>>, vector<1x20xf32>
    %c0_3 = arith.constant 0 : index
    %c0_4 = arith.constant 0 : index
    %2 = vector.load %arg4[%c0_3, %c0_4] : memref<20x10xf32, #tpu.memory_space<vmem>>, vector<20x10xf32>
    %c0_5 = arith.constant 0 : index
    %c0_6 = arith.constant 0 : index
    %3 = vector.load %arg5[%c0_5, %c0_6] : memref<1x10xf32, #tpu.memory_space<vmem>>, vector<1x10xf32>
    %c0_7 = arith.constant 0 : index
    %c0_8 = arith.constant 0 : index
    %4 = vector.load %arg6[%c0_7, %c0_8] : memref<10x20xf32, #tpu.memory_space<vmem>>, vector<10x20xf32>
    %c0_9 = arith.constant 0 : index
    %c0_10 = arith.constant 0 : index
    %5 = vector.load %arg7[%c0_9, %c0_10] : memref<1x20xf32, #tpu.memory_space<vmem>>, vector<1x20xf32>
    %c0_11 = arith.constant 0 : index
    %c0_12 = arith.constant 0 : index
    %6 = vector.load %arg8[%c0_11, %c0_12] : memref<20x5xf32, #tpu.memory_space<vmem>>, vector<20x5xf32>
    %c0_13 = arith.constant 0 : index
    %c0_14 = arith.constant 0 : index
    %7 = vector.load %arg9[%c0_13, %c0_14] : memref<1x5xf32, #tpu.memory_space<vmem>>, vector<1x5xf32>
    %c0_i32 = arith.constant 0 : i32
    %c16_i32 = arith.constant 16 : i32
    %8 = arith.muli %c0_i32, %c16_i32 : i32
    %9 = tpu.assume_multiple %8, 16 : i32
    %10 = arith.index_cast %9 : i32 to index
    %c0_15 = arith.constant 0 : index
    %11 = vector.load %arg1[%10, %c0_15] : memref<16x10xf32, #tpu.memory_space<vmem>>, vector<16x10xf32>
    %cst = arith.constant dense<0.000000e+00> : vector<16x20xf32>
    %12 = tpu.matmul %11, %0, %cst {dimension_numbers = #tpu.dot_dimension_numbers<[1], [0], [0], [1], [0, 0, 1, 1], [], []>} : vector<16x10xf32>, vector<10x20xf32>, vector<16x20xf32> -> vector<16x20xf32>
    %13 = vector.broadcast %1 : vector<1x20xf32> to vector<16x20xf32>
    %14 = arith.addf %12, %13 : vector<16x20xf32>
    %cst_16 = arith.constant 0.000000e+00 : f32
    %15 = vector.broadcast %cst_16 : f32 to vector<16x20xf32>
    %16 = arith.maximumf %14, %15 : vector<16x20xf32>
    %cst_17 = arith.constant dense<0.000000e+00> : vector<16x10xf32>
    %17 = tpu.matmul %16, %2, %cst_17 {dimension_numbers = #tpu.dot_dimension_numbers<[1], [0], [0], [1], [0, 0, 1, 1], [], []>} : vector<16x20xf32>, vector<20x10xf32>, vector<16x10xf32> -> vector<16x10xf32>
    %18 = vector.broadcast %3 : vector<1x10xf32> to vector<16x10xf32>
    %19 = arith.addf %17, %18 : vector<16x10xf32>
    %cst_18 = arith.constant 0.000000e+00 : f32
    %20 = vector.broadcast %cst_18 : f32 to vector<16x10xf32>
    %21 = arith.maximumf %19, %20 : vector<16x10xf32>
    %cst_19 = arith.constant dense<0.000000e+00> : vector<16x20xf32>
    %22 = tpu.matmul %21, %4, %cst_19 {dimension_numbers = #tpu.dot_dimension_numbers<[1], [0], [0], [1], [0, 0, 1, 1], [], []>} : vector<16x10xf32>, vector<10x20xf32>, vector<16x20xf32> -> vector<16x20xf32>
    %23 = vector.broadcast %5 : vector<1x20xf32> to vector<16x20xf32>
    %24 = arith.addf %22, %23 : vector<16x20xf32>
    %25 = arith.addf %14, %24 : vector<16x20xf32>
    %cst_20 = arith.constant dense<0.000000e+00> : vector<16x5xf32>
    %26 = tpu.matmul %25, %6, %cst_20 {dimension_numbers = #tpu.dot_dimension_numbers<[1], [0], [0], [1], [0, 0, 1, 1], [], []>} : vector<16x20xf32>, vector<20x5xf32>, vector<16x5xf32> -> vector<16x5xf32>
    %27 = vector.broadcast %7 : vector<1x5xf32> to vector<16x5xf32>
    %28 = arith.addf %26, %27 : vector<16x5xf32>
    %29 = arith.index_cast %9 : i32 to index
    %c0_21 = arith.constant 0 : index
    %30 = vector.load %arg10[%29, %c0_21] : memref<16x5xf32, #tpu.memory_space<vmem>>, vector<16x5xf32>
    tpu.vector_store %arg10[%29, %c0_21], %28 {strides = array<i32>} : memref<16x5xf32, #tpu.memory_space<vmem>>, vector<16x5xf32>,
    %c1_i32 = arith.constant 1 : i32
    return
  }
  func.func @transform_0(%arg0: i32) -> (i32, i32) {
    %c0_i32 = arith.constant 0 : i32
    %c0_i32_0 = arith.constant 0 : i32
    return %arg0, %c0_i32 : i32, i32
  }
  func.func @transform_1(%arg0: i32) -> (i32, i32) {
    %c0_i32 = arith.constant 0 : i32
    %c0_i32_0 = arith.constant 0 : i32
    %c0_i32_1 = arith.constant 0 : i32
    return %c0_i32, %c0_i32_0 : i32, i32
  }
  func.func @transform_2(%arg0: i32) -> (i32, i32) {
    %c0_i32 = arith.constant 0 : i32
    %c0_i32_0 = arith.constant 0 : i32
    %c0_i32_1 = arith.constant 0 : i32
    return %c0_i32, %c0_i32_0 : i32, i32
  }
  func.func @transform_3(%arg0: i32) -> (i32, i32) {
    %c0_i32 = arith.constant 0 : i32
    %c0_i32_0 = arith.constant 0 : i32
    %c0_i32_1 = arith.constant 0 : i32
    return %c0_i32, %c0_i32_0 : i32, i32
  }
  func.func @transform_4(%arg0: i32) -> (i32, i32) {
    %c0_i32 = arith.constant 0 : i32
    %c0_i32_0 = arith.constant 0 : i32
    %c0_i32_1 = arith.constant 0 : i32
    return %c0_i32, %c0_i32_0 : i32, i32
  }
  func.func @transform_5(%arg0: i32) -> (i32, i32) {
    %c0_i32 = arith.constant 0 : i32
    %c0_i32_0 = arith.constant 0 : i32
    %c0_i32_1 = arith.constant 0 : i32
    return %c0_i32, %c0_i32_0 : i32, i32
  }
  func.func @transform_6(%arg0: i32) -> (i32, i32) {
    %c0_i32 = arith.constant 0 : i32
    %c0_i32_0 = arith.constant 0 : i32
    %c0_i32_1 = arith.constant 0 : i32
    return %c0_i32, %c0_i32_0 : i32, i32
  }
  func.func @transform_7(%arg0: i32) -> (i32, i32) {
    %c0_i32 = arith.constant 0 : i32
    %c0_i32_0 = arith.constant 0 : i32
    %c0_i32_1 = arith.constant 0 : i32
    return %c0_i32, %c0_i32_0 : i32, i32
  }
  func.func @transform_8(%arg0: i32) -> (i32, i32) {
    %c0_i32 = arith.constant 0 : i32
    %c0_i32_0 = arith.constant 0 : i32
    %c0_i32_1 = arith.constant 0 : i32
    return %c0_i32, %c0_i32_0 : i32, i32
  }
  func.func @transform_9(%arg0: i32) -> (i32, i32) {
    %c0_i32 = arith.constant 0 : i32
    %c0_i32_0 = arith.constant 0 : i32
    return %arg0, %c0_i32 : i32, i32
  }
}

</mosaic_0001>

<llo_original>
// kernel: tpu_custom_call.1
$region0: #{tpu_custom_call.1}
  #allocation0 [shape = 'u32[]', space=smem, size = 0x4, offset = 0x4, fixed_abs, tag = 'smem constant byte address 0x4 - core index']
  #allocation1 [shape = 'u32[144,128]{1,0:T(1,128)}', space=vmem, size = 0x12000, scoped, tag = 'internal scratch']
  %s0 = inlined_call_operand.vmem [shape: f32[16,10], index: 0, kind: input, shape index: {}]
  %s1 = inlined_call_operand.vmem [shape: f32[10,20], index: 1, kind: input, shape index: {}]
  %s2 = inlined_call_operand.vmem [shape: f32[1,20], index: 2, kind: input, shape index: {}]
  %s3 = inlined_call_operand.vmem [shape: f32[20,10], index: 3, kind: input, shape index: {}]
  %s4 = inlined_call_operand.vmem [shape: f32[1,10], index: 4, kind: input, shape index: {}]
  %s5 = inlined_call_operand.vmem [shape: f32[10,20], index: 5, kind: input, shape index: {}]
  %s6 = inlined_call_operand.vmem [shape: f32[1,20], index: 6, kind: input, shape index: {}]
  %s7 = inlined_call_operand.vmem [shape: f32[20,5], index: 7, kind: input, shape index: {}]
  %s8 = inlined_call_operand.vmem [shape: f32[1,5], index: 8, kind: input, shape index: {}]
  %s9 = inlined_call_operand.vmem [shape: f32[16,5], index: 9, kind: output, shape index: {}]
  %s10 = sld [smem:[#allocation0]]
  $region46: #{tpu_custom_call.1} parent=0
    _
  %s12 = ssub.s32 1, %s10
  %s13 = scalar_select 0, %s12, %s10
  // Predicated region
  $region2: #{tpu_custom_call.1} parent=0 // pred_check
    _
  $region3: #{tpu_custom_call.1} parent=0 // pred_check_branch
    %15 = sbr.rel (0) target = $region5
  $region4: #{tpu_custom_call.1} parent=0 // pred_region
    _
  $region5: #{tpu_custom_call.1} parent=0 // pred_fallthru
    _
  // Predicated region
  $region6: #{tpu_custom_call.1} parent=0 // pred_check
    _
  $region7: #{tpu_custom_call.1} parent=0 // pred_check_branch
    %17 = sbr.rel (0) target = $region9
  $region8: #{tpu_custom_call.1} parent=0 // pred_region
    _
  $region9: #{tpu_custom_call.1} parent=0 // pred_fallthru
    _
  // Predicated region
  $region10: #{tpu_custom_call.1} parent=0 // pred_check
    _
  $region11: #{tpu_custom_call.1} parent=0 // pred_check_branch
    %19 = sbr.rel (0) target = $region13
  $region12: #{tpu_custom_call.1} parent=0 // pred_region
    _
  $region13: #{tpu_custom_call.1} parent=0 // pred_fallthru
    _
  // Predicated region
  $region14: #{tpu_custom_call.1} parent=0 // pred_check
    _
  $region15: #{tpu_custom_call.1} parent=0 // pred_check_branch
    %21 = sbr.rel (0) target = $region17
  $region16: #{tpu_custom_call.1} parent=0 // pred_region
    _
  $region17: #{tpu_custom_call.1} parent=0 // pred_fallthru
    _
  // Predicated region
  $region18: #{tpu_custom_call.1} parent=0 // pred_check
    _
  $region19: #{tpu_custom_call.1} parent=0 // pred_check_branch
    %23 = sbr.rel (0) target = $region21
  $region20: #{tpu_custom_call.1} parent=0 // pred_region
    _
  $region21: #{tpu_custom_call.1} parent=0 // pred_fallthru
    _
  // Predicated region
  $region22: #{tpu_custom_call.1} parent=0 // pred_check
    _
  $region23: #{tpu_custom_call.1} parent=0 // pred_check_branch
    %25 = sbr.rel (0) target = $region25
  $region24: #{tpu_custom_call.1} parent=0 // pred_region
    _
  $region25: #{tpu_custom_call.1} parent=0 // pred_fallthru
    _
  // Predicated region
  $region26: #{tpu_custom_call.1} parent=0 // pred_check
    _
  $region27: #{tpu_custom_call.1} parent=0 // pred_check_branch
    %27 = sbr.rel (0) target = $region29
  $region28: #{tpu_custom_call.1} parent=0 // pred_region
    _
  $region29: #{tpu_custom_call.1} parent=0 // pred_fallthru
    _
  // Predicated region
  $region30: #{tpu_custom_call.1} parent=0 // pred_check
    _
  $region31: #{tpu_custom_call.1} parent=0 // pred_check_branch
    %29 = sbr.rel (0) target = $region33
  $region32: #{tpu_custom_call.1} parent=0 // pred_region
    _
  $region33: #{tpu_custom_call.1} parent=0 // pred_fallthru
    _
  // Predicated region
  $region34: #{tpu_custom_call.1} parent=0 // pred_check
    _
  $region35: #{tpu_custom_call.1} parent=0 // pred_check_branch
    %31 = sbr.rel (0) target = $region37
  $region36: #{tpu_custom_call.1} parent=0 // pred_region
    _
  $region37: #{tpu_custom_call.1} parent=0 // pred_fallthru
    _
  %v32 = vld [vmem:[%s1] sm:$0xff]
  %v33 = vld [vmem:[%s1 + $0x8] sm:$0x3]
  %v34 = vld [vmem:[%s2] sm:$0x1]
  %v35 = vld [vmem:[%s3] sm:$0xff]
  %v36 = vld [vmem:[%s3 + $0x8] sm:$0xff]
  %v37 = vld [vmem:[%s3 + $0x10] sm:$0xf]
  %v38 = vld [vmem:[%s4] sm:$0x1]
  %v39 = vld [vmem:[%s5] sm:$0xff]
  %v40 = vld [vmem:[%s5 + $0x8] sm:$0x3]
  %v41 = vld [vmem:[%s6] sm:$0x1]
  %v42 = vld [vmem:[%s7] sm:$0xff]
  %v43 = vld [vmem:[%s7 + $0x8] sm:$0xff]
  %v44 = vld [vmem:[%s7 + $0x10] sm:$0xf]
  %v45 = vld [vmem:[%s8] sm:$0x1]
  %v46 = vld [vmem:[%s0] sm:$0xff]
  %v47 = vld [vmem:[%s0 + $0x8] sm:$0xff]
  %v49 = vlaneseq
  %v50 = vshrl.u32 %v49, 7
  %v51 = vsub.s32 0, %v50
  %v52 = vrot.slane %v34, %v51
  %vm54 = vcmask 80896
  %v56 = vsel %vm54, %v46, 0
  %v59 = vsel %vm54, %v47, 0
  %vm61 = vcmask 1041408
  %v63 = vsel %vm61, %v33, 0
  %65 = vmatprep.subr.mxu0 0.0
  %66 = vmatpush1.msra.mxu0 %v32
  %67 = vmatprep.subr.mxu0 0.0
  %68 = vmatpush1.msra.mxu0 %v63
  %69 = vmatprep.subr.mxu0 0.0
  %70 = vmatpush1.msra.mxu0 0.0
  %71 = vmatprep.subr.mxu0 0.0
  %72 = vmatpush1.msra.mxu0 0.0
  %73 = vmatprep.subr.mxu0 0.0
  %74 = vmatpush1.msra.mxu0 0.0
  %75 = vmatprep.subr.mxu0 0.0
  %76 = vmatpush1.msra.mxu0 0.0
  %77 = vmatprep.subr.mxu0 0.0
  %78 = vmatpush1.msra.mxu0 0.0
  %79 = vmatprep.subr.mxu0 0.0
  %80 = vmatpush1.msra.mxu0 0.0
  %81 = vmatprep.subr.mxu0 0.0
  %82 = vmatpush1.msra.mxu0 0.0
  %83 = vmatprep.subr.mxu0 0.0
  %84 = vmatpush1.msra.mxu0 0.0
  %85 = vmatprep.subr.mxu0 0.0
  %86 = vmatpush1.msra.mxu0 0.0
  %87 = vmatprep.subr.mxu0 0.0
  %88 = vmatpush1.msra.mxu0 0.0
  %89 = vmatprep.subr.mxu0 0.0
  %90 = vmatpush1.msra.mxu0 0.0
  %91 = vmatprep.subr.mxu0 0.0
  %92 = vmatpush1.msra.mxu0 0.0
  %93 = vmatprep.subr.mxu0 0.0
  %94 = vmatpush1.msra.mxu0 0.0
  %95 = vmatprep.subr.mxu0 0.0
  %96 = vmatpush1.msra.mxu0 0.0
  %97 = vmatprep.subr.mxu0 0.0
  %98 = vmatpush1.msra.mxu0 0.0
  %99 = vmatprep.subr.mxu0 0.0
  %100 = vmatpush1.msra.mxu0 0.0
  %101 = vmatprep.subr.mxu0 0.0
  %102 = vmatpush1.msra.mxu0 0.0
  %103 = vmatprep.subr.mxu0 0.0
  %104 = vmatpush1.msra.mxu0 0.0
  %105 = vmatprep.subr.mxu0 0.0
  %106 = vmatpush1.msra.mxu0 0.0
  %107 = vmatprep.subr.mxu0 0.0
  %108 = vmatpush1.msra.mxu0 0.0
  %109 = vmatprep.subr.mxu0 0.0
  %110 = vmatpush1.msra.mxu0 0.0
  %111 = vmatprep.subr.mxu0 0.0
  %112 = vmatpush1.msra.mxu0 0.0
  %113 = vmatprep.subr.mxu0 0.0
  %114 = vmatpush1.msra.mxu0 0.0
  %115 = vmatprep.subr.mxu0 0.0
  %116 = vmatpush1.msra.mxu0 0.0
  %117 = vmatprep.subr.mxu0 0.0
  %118 = vmatpush1.msra.mxu0 0.0
  %119 = vmatprep.subr.mxu0 0.0
  %120 = vmatpush1.msra.mxu0 0.0
  %121 = vmatprep.subr.mxu0 0.0
  %122 = vmatpush1.msra.mxu0 0.0
  %123 = vmatprep.subr.mxu0 0.0
  %124 = vmatpush1.msra.mxu0 0.0
  %125 = vmatprep.subr.mxu0 0.0
  %126 = vmatpush1.msra.mxu0 0.0
  %127 = vmatprep.subr.mxu0 0.0
  %128 = vmatpush1.msra.mxu0 0.0
  %129 = vmatprep.mubr.f32.mxu0 0.0
  %130 = vmatmul.mubr.f32.gmra.mrb[0].mxu0 %v56
  %v131 = vpop.f32.mrb[0].mxu0
  %v132 = vadd.f32 %v52, %v131
  %v133 = vpop.f32.mrb[0].mxu0
  %134 = vmatprep.mubr.f32.mxu0 0.0
  %135 = vmatmul.mubr.f32.gmra.mrb[0].mxu0 %v59
  %v136 = vpop.f32.mrb[0].mxu0
  %v137 = vadd.f32 %v52, %v136
  %v138 = vpop.f32.mrb[0].mxu0
  %139 = vdwg.mxu0
  %v140 = vmax.f32 %v132, 0.0
  %v141 = vmax.f32 %v137, 0.0
  %v143 = vlaneseq
  %v144 = vshrl.u32 %v143, 7
  %v145 = vsub.s32 0, %v144
  %v146 = vrot.slane %v38, %v145
  %vm148 = vcmask 162816
  %v150 = vsel %vm148, %v140, 0
  %v153 = vsel %vm148, %v141, 0
  %vm155 = vcmask 1043456
  %v157 = vsel %vm155, %v37, 0
  %159 = vmatprep.subr.mxu0 0.0
  %160 = vmatpush1.msra.mxu0 %v35
  %161 = vmatprep.subr.mxu0 0.0
  %162 = vmatpush1.msra.mxu0 %v36
  %163 = vmatprep.subr.mxu0 0.0
  %164 = vmatpush1.msra.mxu0 %v157
  %165 = vmatprep.subr.mxu0 0.0
  %166 = vmatpush1.msra.mxu0 0.0
  %167 = vmatprep.subr.mxu0 0.0
  %168 = vmatpush1.msra.mxu0 0.0
  %169 = vmatprep.subr.mxu0 0.0
  %170 = vmatpush1.msra.mxu0 0.0
  %171 = vmatprep.subr.mxu0 0.0
  %172 = vmatpush1.msra.mxu0 0.0
  %173 = vmatprep.subr.mxu0 0.0
  %174 = vmatpush1.msra.mxu0 0.0
  %175 = vmatprep.subr.mxu0 0.0
  %176 = vmatpush1.msra.mxu0 0.0
  %177 = vmatprep.subr.mxu0 0.0
  %178 = vmatpush1.msra.mxu0 0.0
  %179 = vmatprep.subr.mxu0 0.0
  %180 = vmatpush1.msra.mxu0 0.0
  %181 = vmatprep.subr.mxu0 0.0
  %182 = vmatpush1.msra.mxu0 0.0
  %183 = vmatprep.subr.mxu0 0.0
  %184 = vmatpush1.msra.mxu0 0.0
  %185 = vmatprep.subr.mxu0 0.0
  %186 = vmatpush1.msra.mxu0 0.0
  %187 = vmatprep.subr.mxu0 0.0
  %188 = vmatpush1.msra.mxu0 0.0
  %189 = vmatprep.subr.mxu0 0.0
  %190 = vmatpush1.msra.mxu0 0.0
  %191 = vmatprep.subr.mxu0 0.0
  %192 = vmatpush1.msra.mxu0 0.0
  %193 = vmatprep.subr.mxu0 0.0
  %194 = vmatpush1.msra.mxu0 0.0
  %195 = vmatprep.subr.mxu0 0.0
  %196 = vmatpush1.msra.mxu0 0.0
  %197 = vmatprep.subr.mxu0 0.0
  %198 = vmatpush1.msra.mxu0 0.0
  %199 = vmatprep.subr.mxu0 0.0
  %200 = vmatpush1.msra.mxu0 0.0
  %201 = vmatprep.subr.mxu0 0.0
  %202 = vmatpush1.msra.mxu0 0.0
  %203 = vmatprep.subr.mxu0 0.0
  %204 = vmatpush1.msra.mxu0 0.0
  %205 = vmatprep.subr.mxu0 0.0
  %206 = vmatpush1.msra.mxu0 0.0
  %207 = vmatprep.subr.mxu0 0.0
  %208 = vmatpush1.msra.mxu0 0.0
  %209 = vmatprep.subr.mxu0 0.0
  %210 = vmatpush1.msra.mxu0 0.0
  %211 = vmatprep.subr.mxu0 0.0
  %212 = vmatpush1.msra.mxu0 0.0
  %213 = vmatprep.subr.mxu0 0.0
  %214 = vmatpush1.msra.mxu0 0.0
  %215 = vmatprep.subr.mxu0 0.0
  %216 = vmatpush1.msra.mxu0 0.0
  %217 = vmatprep.subr.mxu0 0.0
  %218 = vmatpush1.msra.mxu0 0.0
  %219 = vmatprep.subr.mxu0 0.0
  %220 = vmatpush1.msra.mxu0 0.0
  %221 = vmatprep.subr.mxu0 0.0
  %222 = vmatpush1.msra.mxu0 0.0
  %223 = vmatprep.mubr.f32.mxu0 0.0
  %224 = vmatmul.mubr.f32.gmra.mrb[0].mxu0 %v150
  %v225 = vpop.f32.mrb[0].mxu0
  %v226 = vadd.f32 %v146, %v225
  %v227 = vpop.f32.mrb[0].mxu0
  %228 = vmatprep.mubr.f32.mxu0 0.0
  %229 = vmatmul.mubr.f32.gmra.mrb[0].mxu0 %v153
  %v230 = vpop.f32.mrb[0].mxu0
  %v231 = vadd.f32 %v146, %v230
  %v232 = vpop.f32.mrb[0].mxu0
  %233 = vdwg.mxu0
  %v234 = vmax.f32 %v226, 0.0
  %v235 = vmax.f32 %v231, 0.0
  %v237 = vlaneseq
  %v238 = vshrl.u32 %v237, 7
  %v239 = vsub.s32 0, %v238
  %v240 = vrot.slane %v41, %v239
  %v243 = vsel %vm54, %v234, 0
  %v246 = vsel %vm54, %v235, 0
  %v249 = vsel %vm61, %v40, 0
  %251 = vmatprep.subr.mxu0 0.0
  %252 = vmatpush1.msra.mxu0 %v39
  %253 = vmatprep.subr.mxu0 0.0
  %254 = vmatpush1.msra.mxu0 %v249
  %255 = vmatprep.subr.mxu0 0.0
  %256 = vmatpush1.msra.mxu0 0.0
  %257 = vmatprep.subr.mxu0 0.0
  %258 = vmatpush1.msra.mxu0 0.0
  %259 = vmatprep.subr.mxu0 0.0
  %260 = vmatpush1.msra.mxu0 0.0
  %261 = vmatprep.subr.mxu0 0.0
  %262 = vmatpush1.msra.mxu0 0.0
  %263 = vmatprep.subr.mxu0 0.0
  %264 = vmatpush1.msra.mxu0 0.0
  %265 = vmatprep.subr.mxu0 0.0
  %266 = vmatpush1.msra.mxu0 0.0
  %267 = vmatprep.subr.mxu0 0.0
  %268 = vmatpush1.msra.mxu0 0.0
  %269 = vmatprep.subr.mxu0 0.0
  %270 = vmatpush1.msra.mxu0 0.0
  %271 = vmatprep.subr.mxu0 0.0
  %272 = vmatpush1.msra.mxu0 0.0
  %273 = vmatprep.subr.mxu0 0.0
  %274 = vmatpush1.msra.mxu0 0.0
  %275 = vmatprep.subr.mxu0 0.0
  %276 = vmatpush1.msra.mxu0 0.0
  %277 = vmatprep.subr.mxu0 0.0
  %278 = vmatpush1.msra.mxu0 0.0
  %279 = vmatprep.subr.mxu0 0.0
  %280 = vmatpush1.msra.mxu0 0.0
  %281 = vmatprep.subr.mxu0 0.0
  %282 = vmatpush1.msra.mxu0 0.0
  %283 = vmatprep.subr.mxu0 0.0
  %284 = vmatpush1.msra.mxu0 0.0
  %285 = vmatprep.subr.mxu0 0.0
  %286 = vmatpush1.msra.mxu0 0.0
  %287 = vmatprep.subr.mxu0 0.0
  %288 = vmatpush1.msra.mxu0 0.0
  %289 = vmatprep.subr.mxu0 0.0
  %290 = vmatpush1.msra.mxu0 0.0
  %291 = vmatprep.subr.mxu0 0.0
  %292 = vmatpush1.msra.mxu0 0.0
  %293 = vmatprep.subr.mxu0 0.0
  %294 = vmatpush1.msra.mxu0 0.0
  %295 = vmatprep.subr.mxu0 0.0
  %296 = vmatpush1.msra.mxu0 0.0
  %297 = vmatprep.subr.mxu0 0.0
  %298 = vmatpush1.msra.mxu0 0.0
  %299 = vmatprep.subr.mxu0 0.0
  %300 = vmatpush1.msra.mxu0 0.0
  %301 = vmatprep.subr.mxu0 0.0
  %302 = vmatpush1.msra.mxu0 0.0
  %303 = vmatprep.subr.mxu0 0.0
  %304 = vmatpush1.msra.mxu0 0.0
  %305 = vmatprep.subr.mxu0 0.0
  %306 = vmatpush1.msra.mxu0 0.0
  %307 = vmatprep.subr.mxu0 0.0
  %308 = vmatpush1.msra.mxu0 0.0
  %309 = vmatprep.subr.mxu0 0.0
  %310 = vmatpush1.msra.mxu0 0.0
  %311 = vmatprep.subr.mxu0 0.0
  %312 = vmatpush1.msra.mxu0 0.0
  %313 = vmatprep.subr.mxu0 0.0
  %314 = vmatpush1.msra.mxu0 0.0
  %315 = vmatprep.mubr.f32.mxu0 0.0
  %316 = vmatmul.mubr.f32.gmra.mrb[0].mxu0 %v243
  %v317 = vpop.f32.mrb[0].mxu0
  %v318 = vadd.f32 %v240, %v317
  %v319 = vpop.f32.mrb[0].mxu0
  %320 = vmatprep.mubr.f32.mxu0 0.0
  %321 = vmatmul.mubr.f32.gmra.mrb[0].mxu0 %v246
  %v322 = vpop.f32.mrb[0].mxu0
  %v323 = vadd.f32 %v240, %v322
  %v324 = vpop.f32.mrb[0].mxu0
  %325 = vdwg.mxu0
  %v326 = vadd.f32 %v132, %v318
  %v327 = vadd.f32 %v137, %v323
  %v329 = vlaneseq
  %v330 = vshrl.u32 %v329, 7
  %v331 = vsub.s32 0, %v330
  %v332 = vrot.slane %v45, %v331
  %v335 = vsel %vm148, %v326, 0
  %v338 = vsel %vm148, %v327, 0
  %v341 = vsel %vm155, %v44, 0
  %343 = vmatprep.subr.mxu0 0.0
  %344 = vmatpush1.msra.mxu0 %v42
  %345 = vmatprep.subr.mxu0 0.0
  %346 = vmatpush1.msra.mxu0 %v43
  %347 = vmatprep.subr.mxu0 0.0
  %348 = vmatpush1.msra.mxu0 %v341
  %349 = vmatprep.subr.mxu0 0.0
  %350 = vmatpush1.msra.mxu0 0.0
  %351 = vmatprep.subr.mxu0 0.0
  %352 = vmatpush1.msra.mxu0 0.0
  %353 = vmatprep.subr.mxu0 0.0
  %354 = vmatpush1.msra.mxu0 0.0
  %355 = vmatprep.subr.mxu0 0.0
  %356 = vmatpush1.msra.mxu0 0.0
  %357 = vmatprep.subr.mxu0 0.0
  %358 = vmatpush1.msra.mxu0 0.0
  %359 = vmatprep.subr.mxu0 0.0
  %360 = vmatpush1.msra.mxu0 0.0
  %361 = vmatprep.subr.mxu0 0.0
  %362 = vmatpush1.msra.mxu0 0.0
  %363 = vmatprep.subr.mxu0 0.0
  %364 = vmatpush1.msra.mxu0 0.0
  %365 = vmatprep.subr.mxu0 0.0
  %366 = vmatpush1.msra.mxu0 0.0
  %367 = vmatprep.subr.mxu0 0.0
  %368 = vmatpush1.msra.mxu0 0.0
  %369 = vmatprep.subr.mxu0 0.0
  %370 = vmatpush1.msra.mxu0 0.0
  %371 = vmatprep.subr.mxu0 0.0
  %372 = vmatpush1.msra.mxu0 0.0
  %373 = vmatprep.subr.mxu0 0.0
  %374 = vmatpush1.msra.mxu0 0.0
  %375 = vmatprep.subr.mxu0 0.0
  %376 = vmatpush1.msra.mxu0 0.0
  %377 = vmatprep.subr.mxu0 0.0
  %378 = vmatpush1.msra.mxu0 0.0
  %379 = vmatprep.subr.mxu0 0.0
  %380 = vmatpush1.msra.mxu0 0.0
  %381 = vmatprep.subr.mxu0 0.0
  %382 = vmatpush1.msra.mxu0 0.0
  %383 = vmatprep.subr.mxu0 0.0
  %384 = vmatpush1.msra.mxu0 0.0
  %385 = vmatprep.subr.mxu0 0.0
  %386 = vmatpush1.msra.mxu0 0.0
  %387 = vmatprep.subr.mxu0 0.0
  %388 = vmatpush1.msra.mxu0 0.0
  %389 = vmatprep.subr.mxu0 0.0
  %390 = vmatpush1.msra.mxu0 0.0
  %391 = vmatprep.subr.mxu0 0.0
  %392 = vmatpush1.msra.mxu0 0.0
  %393 = vmatprep.subr.mxu0 0.0
  %394 = vmatpush1.msra.mxu0 0.0
  %395 = vmatprep.subr.mxu0 0.0
  %396 = vmatpush1.msra.mxu0 0.0
  %397 = vmatprep.subr.mxu0 0.0
  %398 = vmatpush1.msra.mxu0 0.0
  %399 = vmatprep.subr.mxu0 0.0
  %400 = vmatpush1.msra.mxu0 0.0
  %401 = vmatprep.subr.mxu0 0.0
  %402 = vmatpush1.msra.mxu0 0.0
  %403 = vmatprep.subr.mxu0 0.0
  %404 = vmatpush1.msra.mxu0 0.0
  %405 = vmatprep.subr.mxu0 0.0
  %406 = vmatpush1.msra.mxu0 0.0
  %407 = vmatprep.mubr.f32.mxu0 0.0
  %408 = vmatmul.mubr.f32.gmra.mrb[0].mxu0 %v335
  %v409 = vpop.f32.mrb[0].mxu0
  %v410 = vadd.f32 %v332, %v409
  %v411 = vpop.f32.mrb[0].mxu0
  %412 = vmatprep.mubr.f32.mxu0 0.0
  %413 = vmatmul.mubr.f32.gmra.mrb[0].mxu0 %v338
  %v414 = vpop.f32.mrb[0].mxu0
  %v415 = vadd.f32 %v332, %v414
  %v416 = vpop.f32.mrb[0].mxu0
  %417 = vdwg.mxu0
  %vm418 = vcmask 39936
  %419 = vst.msk [vmem:[%s9] sm:$0xff] %vm418, %v410
  %420 = vst.msk [vmem:[%s9 + $0x8] sm:$0xff] %vm418, %v415
  // Predicated region
  $region38: #{tpu_custom_call.1} parent=0 // pred_check
    _
  $region39: #{tpu_custom_call.1} parent=0 // pred_check_branch
    %422 = sbr.rel (0) target = $region41
  $region40: #{tpu_custom_call.1} parent=0 // pred_region
    _
  $region41: #{tpu_custom_call.1} parent=0 // pred_fallthru
    _
  // Predicated region
  $region42: #{tpu_custom_call.1} parent=0 // pred_check
    _
  $region43: #{tpu_custom_call.1} parent=0 // pred_check_branch
    %424 = sbr.rel (0) target = $region45
  $region44: #{tpu_custom_call.1} parent=0 // pred_region
    _
  $region45: #{tpu_custom_call.1} parent=0 // pred_fallthru
    _

</llo_original>
